<compile_context>
chip_gen: v5e
topology: v5e:2x2
jax: 0.10.0
libtpu: 0.0.40
codegen_flags: <defaults>
</compile_context>

<pallas_src>
import jax
import jax.numpy as jnp
from jax.experimental import pallas as pl
from jax.experimental.pallas import tpu as pltpu


def eao_encoder_kernel(x_ref, w_ref, params_ref, mask_ref, y_ref):
    """Fused token projection + bias + LayerNorm(eps=1e-6) + length mask for one row tile."""
    de = y_ref.shape[-1]
    inv_de = 1.0 / de

    # --- token projection on the MXU: bf16 inputs, f32 accumulation ---
    y = jnp.dot(x_ref[...], w_ref[...], preferred_element_type=jnp.float32)   # (tm, De)

    params = params_ref[...]            # (3, De) f32, VMEM-resident across all grid steps
    y = y + params[0:1, :]              # + bias

    # --- LayerNorm over the embedding (lane) axis, eps = 1e-6 ---
    # Two-pass variance (subtract mean before squaring): matches PyTorch semantics and
    # avoids E[y^2]-E[y]^2 cancellation at large De.
    mean = jnp.sum(y, axis=-1, keepdims=True) * inv_de
    c = y - mean
    var = jnp.sum(c * c, axis=-1, keepdims=True) * inv_de
    y = c * jax.lax.rsqrt(var + 1e-6)
    y = y * params[1:2, :] + params[2:3, :]       # * gamma + beta

    # --- length mask: (tm, 1) column broadcasts along the lane axis for free ---
    y = y * mask_ref[...].astype(jnp.float32)

    y_ref[...] = y.astype(y_ref.dtype)


def eao_word2vec_encode(word_embeds, lens, w, b, gamma, beta, *,
                        tile_rows=2048, out_dtype=jnp.bfloat16):
    """word_embeds: (B, L, Dw) (ideally already bf16); lens: (B,) int;
    w: (Dw, De) (torch Linear weight.T); b, gamma, beta: (De,).
    Returns (y, mask): y (B, L, De) out_dtype, mask (B, L) f32."""
    B, L, Dw = word_embeds.shape
    De = w.shape[1]
    rows = B * L

    # Row tile: biggest tile up to tile_rows (per-step pipeline overhead ~0.35us, so bigger
    # is better while VMEM allows).  Per-tile VMEM = 2*tm*Dw*2 (x, double-buffered)
    # + 2*tm*De*itemsize (out) + mask + the resident (Dw, De) bf16 weight -- a few MB even
    # at tm=4096 for typical Dw/De, comfortably under the 32 MiB scoped limit on
    # v5e / v6e / v7x alike (no generation-specific shrinking needed at these shapes).
    if rows <= tile_rows:
        tm = rows                                  # single block == full array dim
    else:
        tm = max(16, (tile_rows // 16) * 16)       # sublane-aligned for bf16 tiles
    grid = (pl.cdiv(rows, tm),)                    # partial last tile handled by Pallas
                                                   # boundary masking (no jnp.pad copies;
                                                   # any NaNs in the OOB tail are discarded)

    # Flatten in the wrapper (contiguous reshape = no copy).  Only cast if the caller did
    # not already hand us bf16 activations (the gather should already produce bf16).
    x_flat = word_embeds.reshape(rows, Dw)
    if x_flat.dtype != jnp.bfloat16:
        x_flat = x_flat.astype(jnp.bfloat16)
    w_bf16 = w.astype(jnp.bfloat16)
    params = jnp.stack([b, gamma, beta], axis=0).astype(jnp.float32)      # (3, De), one DMA

    lens_i = lens.astype(jnp.int32)
    mask = (jnp.arange(L, dtype=jnp.int32)[None, :] < lens_i[:, None]).astype(jnp.float32)
    mask_col = mask.astype(jnp.bfloat16).reshape(rows, 1)   # bf16 column: half the DMA/VMEM
    # TODO(synk): eliminate the mask input stream entirely by scalar-prefetching `lens` into
    # SMEM and synthesizing the mask in-kernel (needs a per-row lens gather or tm % L == 0).

    out_bytes = jnp.dtype(out_dtype).itemsize
    cost = pl.CostEstimate(
        flops=2 * rows * Dw * De,
        transcendentals=rows,  # one rsqrt per row
        bytes_accessed=(x_flat.size * 2 + w_bf16.size * 2 + params.size * 4
                        + mask_col.size * 2 + rows * De * out_bytes),
    )

    y_flat = pl.pallas_call(
        eao_encoder_kernel,
        out_shape=jax.ShapeDtypeStruct((rows, De), out_dtype),
        grid=grid,
        in_specs=[
            pl.BlockSpec((tm, Dw), lambda i: (i, 0)),   # activation rows (pipelined)
            pl.BlockSpec((Dw, De), lambda i: (0, 0)),   # projection weight (resident)
            pl.BlockSpec((3, De), lambda i: (0, 0)),    # packed bias/gamma/beta (resident)
            pl.BlockSpec((tm, 1), lambda i: (i, 0)),    # per-row bf16 mask column (pipelined)
        ],
        out_specs=pl.BlockSpec((tm, De), lambda i: (i, 0)),
        # TODO(synk): on v7x verify in the trace that the row axis is actually split across
        # the two TensorCores; if not, switch to pltpu.CORE_PARALLEL / pl.core_map.
        # TODO(synk): if the trace shows exposed DMA after the larger tiles, bump the x/out
        # BlockSpecs to pipeline_mode=pl.Buffered(3).
        # TODO(synk): if production dim_embed < 128, pack 128//De rows per output lane-row
        # (or otherwise make the store lane-dense) to avoid masked vst.msk partial stores.
        compiler_params=pltpu.CompilerParams(
            dimension_semantics=("parallel",),          # megacore split on v7x
            vmem_limit_bytes=32 * 1024 * 1024,
        ),
        cost_estimate=cost,
    )(x_flat, w_bf16, params, mask_col)

    y = y_flat.reshape(B, L, De)
    return y, mask


def eao_encoder_forward(cap_ids, lens, emb_table, w, b, gamma, beta,
                        out_dtype=jnp.bfloat16):
    # Cast the table once so the gather emits bf16 activations directly (in production the
    # table should simply be stored in bf16); this removes a full read+write HBM cast pass
    # over the activation tensor that the previous version paid on every call.
    emb_bf16 = emb_table if emb_table.dtype == jnp.bfloat16 else emb_table.astype(jnp.bfloat16)
    # TODO(synk): fold the embedding gather into the kernel (PrefetchScalarGridSpec with
    # cap_ids in SMEM + per-row / grouped DMA gather) only when dim_word is large enough
    # (>= ~256 bf16 elems per row) that per-row DMA descriptor overhead doesn't dominate;
    # below that the XLA bf16 gather used here is the better option.
    word_embeds = jnp.take(emb_bf16, cap_ids, axis=0)
    return eao_word2vec_encode(word_embeds, lens, w, b, gamma, beta, out_dtype=out_dtype)


def _reference(word_embeds, lens, w, b, gamma, beta):
    # Mirrors the kernel's bf16 MXU inputs / f32 accumulation; LayerNorm uses the standard
    # two-pass variance (PyTorch semantics), same as the kernel.
    y = jnp.einsum("bld,de->ble",
                   word_embeds.astype(jnp.bfloat16), w.astype(jnp.bfloat16),
                   preferred_element_type=jnp.float32) + b
    mean = jnp.mean(y, axis=-1, keepdims=True)
    var = jnp.mean((y - mean) ** 2, axis=-1, keepdims=True)
    y = (y - mean) / jnp.sqrt(var + 1e-6)
    y = y * gamma + beta
    mask = (jnp.arange(word_embeds.shape[1])[None, :] < lens[:, None]).astype(jnp.float32)
    return y * mask[:, :, None], mask


if __name__ == "__main__":
    B, L, Dw, De, V = 2, 8, 48, 32, 100

    key = jax.random.PRNGKey(0)
    k_emb, k_ids, k_w, k_b, k_g, k_be = jax.random.split(key, 6)

    emb_table = jax.random.normal(k_emb, (V, Dw), dtype=jnp.float32)
    cap_ids = jax.random.randint(k_ids, (B, L), 0, V, dtype=jnp.int32)
    lens = jnp.array([5, 8], dtype=jnp.int32)

    # Parameters (shapes follow nn.Linear(Dw, De) + nn.LayerNorm(De)); w is torch weight.T.
    w = jax.random.normal(k_w, (Dw, De), dtype=jnp.float32) * 0.1
    b = jax.random.normal(k_b, (De,), dtype=jnp.float32) * 0.1
    gamma = 1.0 + 0.05 * jax.random.normal(k_g, (De,), dtype=jnp.float32)
    beta = 0.05 * jax.random.normal(k_be, (De,), dtype=jnp.float32)

    y, mask = eao_encoder_forward(cap_ids, lens, emb_table, w, b, gamma, beta)
    jax.block_until_ready((y, mask))

    word_embeds_bf16 = jnp.take(emb_table.astype(jnp.bfloat16), cap_ids, axis=0)
    y_ref, mask_ref = _reference(word_embeds_bf16, lens, w, b, gamma, beta)

    assert y.shape == (B, L, De) and mask.shape == (B, L)
    y_f32 = y.astype(jnp.float32)
    err = float(jnp.max(jnp.abs(y_f32 - y_ref)))
    # bf16 output: tolerance covers the final bf16 rounding of O(1)-magnitude LN outputs.
    assert jnp.allclose(y_f32, y_ref, atol=2e-2, rtol=2e-2), err
    assert jnp.allclose(mask, mask_ref)

    print("KERNEL_OK")
</pallas_src>

<mosaic_0001>
module attributes {stable_mosaic.version = 11 : i64} {
  func.func @eao_encoder_kernel(%arg0: i32, %arg1: memref<16x48xbf16, #tpu.memory_space<vmem>>, %arg2: memref<48x32xbf16, #tpu.memory_space<vmem>>, %arg3: memref<3x32xf32, #tpu.memory_space<vmem>>, %arg4: memref<16x1xbf16, #tpu.memory_space<vmem>>, %arg5: memref<16x32xbf16, #tpu.memory_space<vmem>>) attributes {dimension_semantics = [#tpu.dimension_semantics<parallel>], iteration_bounds = array<i64: 1>, scalar_prefetch = 0 : i64, scratch_operands = 0 : i64, tpu.core_type = #tpu.core_type<tc>, window_params = [{transform_indices = @transform_0, window_bounds = array<i64: 16, 48>}, {pipeline_mode = #tpu.pipeline_mode<synchronous>, transform_indices = @transform_1, window_bounds = array<i64: 48, 32>}, {pipeline_mode = #tpu.pipeline_mode<synchronous>, transform_indices = @transform_2, window_bounds = array<i64: 3, 32>}, {transform_indices = @transform_3, window_bounds = array<i64: 16, 1>}, {transform_indices = @transform_4, window_bounds = array<i64: 16, 32>}]} {
    %c0 = arith.constant 0 : index
    %c0_0 = arith.constant 0 : index
    %0 = vector.load %arg1[%c0, %c0_0] : memref<16x48xbf16, #tpu.memory_space<vmem>>, vector<16x48xbf16>
    %c0_1 = arith.constant 0 : index
    %c0_2 = arith.constant 0 : index
    %1 = vector.load %arg2[%c0_1, %c0_2] : memref<48x32xbf16, #tpu.memory_space<vmem>>, vector<48x32xbf16>
    %cst = arith.constant dense<0.000000e+00> : vector<16x32xf32>
    %2 = tpu.matmul %0, %1, %cst {dimension_numbers = #tpu.dot_dimension_numbers<[1], [0], [0], [1], [0, 0, 1, 1], [], []>} : vector<16x48xbf16>, vector<48x32xbf16>, vector<16x32xf32> -> vector<16x32xf32>
    %c0_3 = arith.constant 0 : index
    %c0_4 = arith.constant 0 : index
    %3 = vector.load %arg3[%c0_3, %c0_4] : memref<3x32xf32, #tpu.memory_space<vmem>>, vector<3x32xf32>
    %4 = vector.extract_strided_slice %3 {offsets = [0, 0], sizes = [1, 32], strides = [1, 1]} : vector<3x32xf32> to vector<1x32xf32>
    %5 = vector.broadcast %4 : vector<1x32xf32> to vector<16x32xf32>
    %6 = arith.addf %2, %5 : vector<16x32xf32>
    %cst_5 = arith.constant dense<0.000000e+00> : vector<16xf32>
    %7 = vector.multi_reduction <add>, %6, %cst_5 [1] : vector<16x32xf32> to vector<16xf32>
    %8 = vector.shape_cast %7 : vector<16xf32> to vector<16x1xf32>
    %cst_6 = arith.constant 3.125000e-02 : f32
    %9 = vector.broadcast %cst_6 : f32 to vector<16x1xf32>
    %10 = arith.mulf %8, %9 : vector<16x1xf32>
    %11 = vector.broadcast %10 : vector<16x1xf32> to vector<16x32xf32>
    %12 = arith.subf %6, %11 : vector<16x32xf32>
    %13 = arith.mulf %12, %12 : vector<16x32xf32>
    %cst_7 = arith.constant dense<0.000000e+00> : vector<16xf32>
    %14 = vector.multi_reduction <add>, %13, %cst_7 [1] : vector<16x32xf32> to vector<16xf32>
    %15 = vector.shape_cast %14 : vector<16xf32> to vector<16x1xf32>
    %cst_8 = arith.constant 3.125000e-02 : f32
    %16 = vector.broadcast %cst_8 : f32 to vector<16x1xf32>
    %17 = arith.mulf %15, %16 : vector<16x1xf32>
    %cst_9 = arith.constant 9.99999997E-7 : f32
    %18 = vector.broadcast %cst_9 : f32 to vector<16x1xf32>
    %19 = arith.addf %17, %18 : vector<16x1xf32>
    %20 = math.rsqrt %19 : vector<16x1xf32>
    %21 = vector.broadcast %20 : vector<16x1xf32> to vector<16x32xf32>
    %22 = arith.mulf %12, %21 : vector<16x32xf32>
    %23 = vector.extract_strided_slice %3 {offsets = [1, 0], sizes = [1, 32], strides = [1, 1]} : vector<3x32xf32> to vector<1x32xf32>
    %24 = vector.broadcast %23 : vector<1x32xf32> to vector<16x32xf32>
    %25 = arith.mulf %22, %24 : vector<16x32xf32>
    %26 = vector.extract_strided_slice %3 {offsets = [2, 0], sizes = [1, 32], strides = [1, 1]} : vector<3x32xf32> to vector<1x32xf32>
    %27 = vector.broadcast %26 : vector<1x32xf32> to vector<16x32xf32>
    %28 = arith.addf %25, %27 : vector<16x32xf32>
    %c0_10 = arith.constant 0 : index
    %c0_11 = arith.constant 0 : index
    %29 = vector.load %arg4[%c0_10, %c0_11] : memref<16x1xbf16, #tpu.memory_space<vmem>>, vector<16x1xbf16>
    %30 = arith.extf %29 : vector<16x1xbf16> to vector<16x1xf32>
    %31 = vector.broadcast %30 : vector<16x1xf32> to vector<16x32xf32>
    %32 = arith.mulf %28, %31 : vector<16x32xf32>
    %33 = arith.truncf %32 : vector<16x32xf32> to vector<16x32xbf16>
    %c0_12 = arith.constant 0 : index
    %c0_13 = arith.constant 0 : index
    %34 = vector.load %arg5[%c0_12, %c0_13] : memref<16x32xbf16, #tpu.memory_space<vmem>>, vector<16x32xbf16>
    tpu.vector_store %arg5[%c0_12, %c0_13], %33 {strides = array<i32>} : memref<16x32xbf16, #tpu.memory_space<vmem>>, vector<16x32xbf16>,
    return
  }
  func.func @transform_0(%arg0: i32) -> (i32, i32) {
    %c0_i32 = arith.constant 0 : i32
    %c0_i32_0 = arith.constant 0 : i32
    return %arg0, %c0_i32 : i32, i32
  }
  func.func @transform_1(%arg0: i32) -> (i32, i32) {
    %c0_i32 = arith.constant 0 : i32
    %c0_i32_0 = arith.constant 0 : i32
    %c0_i32_1 = arith.constant 0 : i32
    return %c0_i32, %c0_i32_0 : i32, i32
  }
  func.func @transform_2(%arg0: i32) -> (i32, i32) {
    %c0_i32 = arith.constant 0 : i32
    %c0_i32_0 = arith.constant 0 : i32
    %c0_i32_1 = arith.constant 0 : i32
    return %c0_i32, %c0_i32_0 : i32, i32
  }
  func.func @transform_3(%arg0: i32) -> (i32, i32) {
    %c0_i32 = arith.constant 0 : i32
    %c0_i32_0 = arith.constant 0 : i32
    return %arg0, %c0_i32 : i32, i32
  }
  func.func @transform_4(%arg0: i32) -> (i32, i32) {
    %c0_i32 = arith.constant 0 : i32
    %c0_i32_0 = arith.constant 0 : i32
    return %arg0, %c0_i32 : i32, i32
  }
}

</mosaic_0001>

<llo_original>
// kernel: tpu_custom_call.1
$region0: #{tpu_custom_call.1}
  #allocation0 [shape = 'u32[]', space=smem, size = 0x4, offset = 0x4, fixed_abs, tag = 'smem constant byte address 0x4 - core index']
  #allocation1 [shape = 'u32[72,128]{1,0:T(1,128)}', space=vmem, size = 0x9000, scoped, tag = 'internal scratch']
  %s0 = inlined_call_operand.vmem [shape: bf16[16,48], index: 0, kind: input, shape index: {}]
  %s1 = inlined_call_operand.vmem [shape: bf16[48,32], index: 1, kind: input, shape index: {}]
  %s2 = inlined_call_operand.vmem [shape: f32[3,32], index: 2, kind: input, shape index: {}]
  %s3 = inlined_call_operand.vmem [shape: bf16[16,1], index: 3, kind: input, shape index: {}]
  %s4 = inlined_call_operand.hbm [shape: bf16[16,32], index: 4, kind: output, shape index: {}]
  %s5 = sld [smem:[#allocation0]]
  $region26: #{tpu_custom_call.1} parent=0
    _
  %s7 = ssub.s32 1, %s5
  %s8 = scalar_select 0, %s7, %s5
  $region1: #{tpu_custom_call.1} parent=0
    #allocation2 [shape = 'u8[4096]{0}', space=vmem, size = 0x1000, scoped, tag = 'output window, operand 0, single buffered']
    #allocation3 [shape = 's32[1]{0}', space=sflag, size = 0x4, scoped, tag = 'scoped memory for tpu_custom_call.1']
    %9 = vsyncpa [#allocation3], 0
    // Predicated region
    $region2: #{tpu_custom_call.1} parent=1 // pred_check
      _
    $region3: #{tpu_custom_call.1} parent=1 // pred_check_branch
      %11 = sbr.rel (0) target = $region5
    $region4: #{tpu_custom_call.1} parent=1 // pred_region
      _
    $region5: #{tpu_custom_call.1} parent=1 // pred_fallthru
      _
    // Predicated region
    $region6: #{tpu_custom_call.1} parent=1 // pred_check
      _
    $region7: #{tpu_custom_call.1} parent=1 // pred_check_branch
      %13 = sbr.rel (0) target = $region9
    $region8: #{tpu_custom_call.1} parent=1 // pred_region
      _
    $region9: #{tpu_custom_call.1} parent=1 // pred_fallthru
      _
    // Predicated region
    $region10: #{tpu_custom_call.1} parent=1 // pred_check
      _
    $region11: #{tpu_custom_call.1} parent=1 // pred_check_branch
      %15 = sbr.rel (0) target = $region13
    $region12: #{tpu_custom_call.1} parent=1 // pred_region
      _
    $region13: #{tpu_custom_call.1} parent=1 // pred_fallthru
      _
    // Predicated region
    $region14: #{tpu_custom_call.1} parent=1 // pred_check
      _
    $region15: #{tpu_custom_call.1} parent=1 // pred_check_branch
      %17 = sbr.rel (0) target = $region17
    $region16: #{tpu_custom_call.1} parent=1 // pred_region
      _
    $region17: #{tpu_custom_call.1} parent=1 // pred_fallthru
      _
    %v19 = vld [vmem:[%s0] sm:$0xf]
    %v20 = vld [vmem:[%s0 + $0x4] sm:$0xf]
    %v21 = vld [vmem:[%s1] sm:$0xf]
    %v22 = vld [vmem:[%s1 + $0x4] sm:$0xf]
    %v23 = vld [vmem:[%s1 + $0x8] sm:$0xf]
    %v24 = vld [vmem:[%s1 + $0xc] sm:$0xf]
    %v25 = vld [vmem:[%s1 + $0x10] sm:$0xf]
    %v26 = vld [vmem:[%s1 + $0x14] sm:$0xf]
    %v27 = vld [vmem:[%s2] sm:$0x7]
    %v28 = vperm.slane %v27, 0
    %v31 = vunpack.c.l.b16 %v19
    %v32 = vunpack.c.l.b16 %v20
    %v33 = vpack.c.b16 %v32, %v31
    %v40 = vunpack.c.l.b16 %v21
    %v41 = vunpack.c.l.b16 %v22
    %v42 = vunpack.c.l.b16 %v23
    %v43 = vunpack.c.l.b16 %v24
    %v44 = vunpack.c.l.b16 %v25
    %v45 = vunpack.c.l.b16 %v26
    %v46 = vpack.c.b16 %v41, %v40
    %v47 = vpack.c.b16 %v43, %v42
    %v48 = vpack.c.b16 %v45, %v44
    %vm52 = vcmask 392192
    %v54 = vsel %vm52, %v33, 0
    %56 = vmatpush.bf16.msra.mxu0 0
    %57 = vmatpush.bf16.msra.mxu0 0
    %58 = vmatpush.bf16.msra.mxu0 0
    %59 = vmatpush.bf16.msra.mxu0 0
    %60 = vmatpush.bf16.msra.mxu0 0
    %61 = vmatpush.bf16.msra.mxu0 %v48
    %62 = vmatpush.bf16.msra.mxu0 %v47
    %63 = vmatpush.bf16.msra.mxu0 %v46
    %64 = vmatmul.bf16.gmra.mxu0 %v54
    %v65 = vpop.f32.mrf.mxu0
    %v66 = vadd.f32 %v28, %v65
    %v67 = vpop.f32.mrf.mxu0
    %v68 = vadd.f32 %v28, %v67
    %69 = vdwg.mxu0
    %vm70 = vcmask 261120
    %v71 = vsel %vm70, %v66, 0.0
    %72 = vadd.xlane.f32.xlu0 %v71
    %v73 = vpop.xlane.xlu0 %72
    %v74 = vsel %vm70, %v68, 0.0
    %75 = vadd.xlane.f32.xlu0 %v74
    %v76 = vpop.xlane.xlu0 %75
    %v77 = vmul.f32 %v73, 0.03125
    %v78 = vmul.f32 %v76, 0.03125
    %v79 = vsub.f32 %v66, %v77
    %v80 = vsub.f32 %v68, %v78
    %v81 = vmul.f32 %v79, %v79
    %v82 = vmul.f32 %v80, %v80
    %v83 = vsel %vm70, %v81, 0.0
    %84 = vadd.xlane.f32.xlu0 %v83
    %v85 = vpop.xlane.xlu0 %84
    %v86 = vsel %vm70, %v82, 0.0
    %87 = vadd.xlane.f32.xlu0 %v86
    %v88 = vpop.xlane.xlu0 %87
    %v89 = vmul.f32 %v85, 0.03125
    %v90 = vmul.f32 %v88, 0.03125
    %v91 = vadd.f32 %v89, 1e-06
    %v92 = vadd.f32 %v90, 1e-06
    %v93 = vrsqrt.pop %v91
    %v94 = vmul.f32 %v93, %v91
    %v95 = vmul.f32 %v94, %v93
    %v96 = vmul.f32 0.5, %v95
    %v97 = vsub.f32 1.5, %v96
    %v98 = vmul.f32 %v93, %v97
    %vm99 = vweird.f32 %v91
    %vm100 = vweird.f32 %v93
    %vm101 = vmor %vm99, %vm100
    %v102 = vsel %vm101, %v93, %v98
    %v103 = vrsqrt.pop %v92
    %v104 = vmul.f32 %v103, %v92
    %v105 = vmul.f32 %v104, %v103
    %v106 = vmul.f32 0.5, %v105
    %v107 = vsub.f32 1.5, %v106
    %v108 = vmul.f32 %v103, %v107
    %vm109 = vweird.f32 %v92
    %vm110 = vweird.f32 %v103
    %vm111 = vmor %vm109, %vm110
    %v112 = vsel %vm111, %v103, %v108
    %v113 = vmul.f32 %v79, %v102
    %v114 = vmul.f32 %v80, %v112
    %v115 = vperm.slane %v27, 1
    %v116 = vmul.f32 %v113, %v115
    %v117 = vmul.f32 %v114, %v115
    %v118 = vperm.slane %v27, 2
    %v119 = vadd.f32 %v116, %v118
    %v120 = vadd.f32 %v117, %v118
    %v121 = vld [vmem:[%s3] sm:$0xf]
    %v122 = vld [vmem:[%s3 + $0x4] sm:$0xf]
    %v123 = vunpack.c.l.bf16 %v121
    %v124 = vunpack.c.l.bf16 %v122
    %126 = vset.pattern.permute.xlu0 0
    %127 = vperm.xlu0 %126, %v123
    %v128 = vpop.permute.xlu0 %127
    %131 = vset.pattern.permute.xlu0 0
    %132 = vperm.xlu0 %131, %v124
    %v133 = vpop.permute.xlu0 %132
    %v135 = vmul.f32 %v119, %v128
    %v136 = vmul.f32 %v120, %v133
    %v137 = vpack.c.bf16 %v135, %v135
    %v138 = vpack.c.bf16 %v136, %v136
    %vm139 = vcmask 257024
    %140 = vst.msk [vmem:[#allocation2] sm:$0xf] %vm139, %v137
    %141 = vst.msk [vmem:[#allocation2 + $0x4] sm:$0xf] %vm139, %v138
    // Predicated region
    $region18: #{tpu_custom_call.1} parent=1 // pred_check
      _
    $region19: #{tpu_custom_call.1} parent=1 // pred_check_branch
      %143 = sbr.rel (0) target = $region21
    $region20: #{tpu_custom_call.1} parent=1 // pred_region
      %145 = vsyncadd [#allocation3], 0
      %s146 = sshll.u32 [#allocation2], 4
      %s147 = int_to_ptr.vmem [resolvable:$true] %s146
      %s148 = sshll.u32 %s4, 4
      %s149 = int_to_ptr.hbm [resolvable:$true] %s148
      %154 = dma.vmem_to_hbm [thread:$0]  %s147, 128, %s149, [#allocation3], 64, 64, 4
    $region21: #{tpu_custom_call.1} parent=1 // pred_fallthru
      _
    // Predicated region
    $region22: #{tpu_custom_call.1} parent=1 // pred_check
      _
    $region23: #{tpu_custom_call.1} parent=1 // pred_check_branch
      %156 = sbr.rel (0) target = $region25
    $region24: #{tpu_custom_call.1} parent=1 // pred_region
      %158 = dma.done [#allocation3], 128
    $region25: #{tpu_custom_call.1} parent=1 // pred_fallthru
      _
    %159 = vsyncpa [#allocation3], 1

</llo_original>
